<compile_context>
chip_gen: v7x
topology: tpu7x:2x2x1
jax: 0.10.0
libtpu: 0.0.40
codegen_flags: <defaults>
</compile_context>

<pallas_src>
import math

import jax
import jax.numpy as jnp
from jax.experimental import pallas as pl
from jax.experimental.pallas import tpu as pltpu

BN_EPS = 1e-5
LANE = 128
MAX_SINGLE_K = 4096


def _round_up(n, m):
    return ((n + m - 1) // m) * m


# ----------------------------------------------------------------------------
# Pallas kernel: out = (bf16(x) @ w_bf16) * scale + bias      (single K block)
# ----------------------------------------------------------------------------
def _fused_head_kernel(x_ref, w_ref, s_ref, b_ref, o_ref):
    x = x_ref[...].astype(jnp.bfloat16)                       # VPU cast, free
    acc = jnp.dot(x, w_ref[...], preferred_element_type=jnp.float32)
    o_ref[...] = (acc * s_ref[...] + b_ref[...]).astype(o_ref.dtype)


def fused_linear_bn(x, w, scale, bias, *, tm, tn):
    """x: [M, K] (any float dtype), w: [K, N] bf16, scale/bias: [1, N] f32.
    Returns [M, N] f32. N must be a multiple of tn; K is a single block."""
    M, K = x.shape
    Kw, N = w.shape
    assert K == Kw and scale.shape == (1, N) and bias.shape == (1, N)
    assert N % tn == 0
    grid = (pl.cdiv(M, tm), N // tn)
    return pl.pallas_call(
        _fused_head_kernel,
        out_shape=jax.ShapeDtypeStruct((M, N), jnp.float32),
        grid_spec=pltpu.PrefetchScalarGridSpec(
            num_scalar_prefetch=0,
            grid=grid,
            in_specs=[
                pl.BlockSpec((tm, K), lambda i, j: (i, 0)),
                pl.BlockSpec((K, tn), lambda i, j: (0, j)),
                pl.BlockSpec((1, tn), lambda i, j: (0, j)),
                pl.BlockSpec((1, tn), lambda i, j: (0, j)),
            ],
            out_specs=pl.BlockSpec((tm, tn), lambda i, j: (i, j)),
        ),
        compiler_params=pltpu.CompilerParams(
            dimension_semantics=("parallel", "parallel")),
    )(x, w, scale, bias)


# ----------------------------------------------------------------------------
# Parameters (PyTorch layout) and one-time prepare step
# ----------------------------------------------------------------------------
def init_predictor_params(key, in_channels, num_classes):
    """Linear weight [out, in], bias [out]; BatchNorm1d gamma/beta/mean/var [out]."""
    ks = jax.random.split(key, 6)
    n_cls, n_box = num_classes, 4 * num_classes
    s = 1.0 / math.sqrt(in_channels)

    def bn(k, n):
        k1, k2, k3, k4 = jax.random.split(k, 4)
        return {
            "gamma": 1.0 + 0.1 * jax.random.normal(k1, (n,), jnp.float32),
            "beta": 0.1 * jax.random.normal(k2, (n,), jnp.float32),
            "mean": 0.1 * jax.random.normal(k3, (n,), jnp.float32),
            "var": jax.random.uniform(k4, (n,), jnp.float32, 0.5, 1.5),
        }

    return {
        "cls_w": s * jax.random.normal(ks[0], (n_cls, in_channels), jnp.float32),
        "cls_b": s * jax.random.normal(ks[1], (n_cls,), jnp.float32),
        "cls_bn": bn(ks[2], n_cls),
        "bbox_w": s * jax.random.normal(ks[3], (n_box, in_channels), jnp.float32),
        "bbox_b": s * jax.random.normal(ks[4], (n_box,), jnp.float32),
        "bbox_bn": bn(ks[5], n_box),
    }


def prepare_predictor(params):
    """One-time: concatenate both heads into one lane-dense bf16 weight slab
    [K, N_pad] (UNSCALED linear weights), and precompute the f32 per-column BN
    scale gamma/sqrt(var+eps) and folded bias (b - mean)*scale + beta."""
    def head(w, b, bn):
        scale = bn["gamma"] / jnp.sqrt(bn["var"] + BN_EPS)      # [out]
        bias = (b - bn["mean"]) * scale + bn["beta"]            # [out]
        return w, scale, bias

    cw, cs, cb = head(params["cls_w"], params["cls_b"], params["cls_bn"])
    bw, bs, bb = head(params["bbox_w"], params["bbox_b"], params["bbox_bn"])
    n_cls, K = cw.shape
    n_box = bw.shape[0]
    N = n_cls + n_box
    assert K <= MAX_SINGLE_K, "single-K-block kernel; see TODO for larger K"

    N_pad = _round_up(N, LANE)
    w_cat = jnp.concatenate([cw, bw], axis=0).T                  # [K, N]
    s_cat = jnp.concatenate([cs, bs], axis=0)                    # [N]
    b_cat = jnp.concatenate([cb, bb], axis=0)                    # [N]

    w_pad = jnp.zeros((K, N_pad), jnp.float32).at[:, :N].set(w_cat)
    s_pad = jnp.zeros((1, N_pad), jnp.float32).at[0, :N].set(s_cat)
    b_pad = jnp.zeros((1, N_pad), jnp.float32).at[0, :N].set(b_cat)

    return {
        "w": w_pad.astype(jnp.bfloat16),   # unscaled weights in bf16
        "scale": s_pad,                    # BN gain applied in f32 epilogue
        "bias": b_pad,
        "n_cls": n_cls,
        "n_box": n_box,
        "K": K,
    }


# ----------------------------------------------------------------------------
# Forward pass (FastRCNNPredictor semantics)
# ----------------------------------------------------------------------------
def fast_rcnn_predictor_forward(prepared, x):
    """x: [R, C] or [R, C, 1, 1].  Returns (scores [R, num_classes],
    bbox_deltas [R, 4*num_classes])."""
    if x.ndim == 4:
        assert x.shape[2:] == (1, 1)
        x = x.reshape(x.shape[0], x.shape[1])
    M, K = x.shape
    assert K == prepared["K"]

    # 16-row alignment (bf16 sublane packing), minimal over-padding, and
    # >= 2 parallel M blocks for large RoI batches (feeds both v7x TCs).
    tm = min(128, _round_up(max(M, 1), 16))

    out = fused_linear_bn(x, prepared["w"], prepared["scale"], prepared["bias"],
                          tm=tm, tn=LANE)

    n_cls, n_box = prepared["n_cls"], prepared["n_box"]
    scores = out[:, :n_cls]
    bbox_deltas = out[:, n_cls:n_cls + n_box]
    return scores, bbox_deltas


# ----------------------------------------------------------------------------
# Pure-JAX reference (exact eval-mode Linear + BatchNorm1d semantics, f32)
# ----------------------------------------------------------------------------
def _bn_eval(y, bn):
    return (y - bn["mean"]) / jnp.sqrt(bn["var"] + BN_EPS) * bn["gamma"] + bn["beta"]


def fast_rcnn_predictor_reference(params, x):
    if x.ndim == 4:
        assert x.shape[2:] == (1, 1)
    x = x.reshape(x.shape[0], -1)
    scores = _bn_eval(x @ params["cls_w"].T + params["cls_b"], params["cls_bn"])
    bbox = _bn_eval(x @ params["bbox_w"].T + params["bbox_b"], params["bbox_bn"])
    return scores, bbox


if __name__ == "__main__":
    num_rois = 32           # RoIs (rows)
    in_channels = 1024      # typical Fast R-CNN head feature width
    num_classes = 6

    key = jax.random.PRNGKey(0)
    k_params, k_x = jax.random.split(key)
    params = init_predictor_params(k_params, in_channels, num_classes)
    x = jax.random.normal(k_x, (num_rois, in_channels, 1, 1), jnp.float32)

    prepared = prepare_predictor(params)
    scores, bbox_deltas = jax.block_until_ready(
        fast_rcnn_predictor_forward(prepared, x))

    ref_scores, ref_bbox = jax.block_until_ready(
        fast_rcnn_predictor_reference(params, x))

    assert scores.shape == (num_rois, num_classes)
    assert bbox_deltas.shape == (num_rois, 4 * num_classes)
    # bf16 MXU operands with f32 accumulation and f32 BN epilogue.
    assert jnp.allclose(scores, ref_scores, atol=2e-2, rtol=2e-2)
    assert jnp.allclose(bbox_deltas, ref_bbox, atol=2e-2, rtol=2e-2)

    print("KERNEL_OK")
</pallas_src>

<mosaic_0001>
module attributes {stable_mosaic.version = 11 : i64} {
  func.func @_fused_head_kernel(%arg0: i32, %arg1: i32, %arg2: memref<32x1024xf32, #tpu.memory_space<vmem>>, %arg3: memref<1024x128xbf16, #tpu.memory_space<vmem>>, %arg4: memref<1x128xf32, #tpu.memory_space<vmem>>, %arg5: memref<1x128xf32, #tpu.memory_space<vmem>>, %arg6: memref<32x128xf32, #tpu.memory_space<vmem>>) attributes {dimension_semantics = [#tpu.dimension_semantics<parallel>, #tpu.dimension_semantics<parallel>], iteration_bounds = array<i64: 1, 1>, scalar_prefetch = 0 : i64, scratch_operands = 0 : i64, tpu.core_type = #tpu.core_type<tc>, window_params = [{transform_indices = @transform_0, window_bounds = array<i64: 32, 1024>}, {transform_indices = @transform_1, window_bounds = array<i64: 1024, 128>}, {transform_indices = @transform_2, window_bounds = array<i64: 1, 128>}, {transform_indices = @transform_3, window_bounds = array<i64: 1, 128>}, {transform_indices = @transform_4, window_bounds = array<i64: 32, 128>}]} {
    %c0 = arith.constant 0 : index
    %c0_0 = arith.constant 0 : index
    %0 = vector.load %arg2[%c0, %c0_0] : memref<32x1024xf32, #tpu.memory_space<vmem>>, vector<32x1024xf32>
    %1 = arith.truncf %0 : vector<32x1024xf32> to vector<32x1024xbf16>
    %c0_1 = arith.constant 0 : index
    %c0_2 = arith.constant 0 : index
    %2 = vector.load %arg3[%c0_1, %c0_2] : memref<1024x128xbf16, #tpu.memory_space<vmem>>, vector<1024x128xbf16>
    %cst = arith.constant dense<0.000000e+00> : vector<32x128xf32>
    %3 = tpu.matmul %1, %2, %cst {dimension_numbers = #tpu.dot_dimension_numbers<[1], [0], [0], [1], [0, 0, 1, 1], [], []>} : vector<32x1024xbf16>, vector<1024x128xbf16>, vector<32x128xf32> -> vector<32x128xf32>
    %c0_3 = arith.constant 0 : index
    %c0_4 = arith.constant 0 : index
    %4 = vector.load %arg4[%c0_3, %c0_4] : memref<1x128xf32, #tpu.memory_space<vmem>>, vector<1x128xf32>
    %5 = vector.broadcast %4 : vector<1x128xf32> to vector<32x128xf32>
    %6 = arith.mulf %3, %5 : vector<32x128xf32>
    %c0_5 = arith.constant 0 : index
    %c0_6 = arith.constant 0 : index
    %7 = vector.load %arg5[%c0_5, %c0_6] : memref<1x128xf32, #tpu.memory_space<vmem>>, vector<1x128xf32>
    %8 = vector.broadcast %7 : vector<1x128xf32> to vector<32x128xf32>
    %9 = arith.addf %6, %8 : vector<32x128xf32>
    %c0_7 = arith.constant 0 : index
    %c0_8 = arith.constant 0 : index
    %10 = vector.load %arg6[%c0_7, %c0_8] : memref<32x128xf32, #tpu.memory_space<vmem>>, vector<32x128xf32>
    tpu.vector_store %arg6[%c0_7, %c0_8], %9 {strides = array<i32>} : memref<32x128xf32, #tpu.memory_space<vmem>>, vector<32x128xf32>,
    return
  }
  func.func @transform_0(%arg0: i32, %arg1: i32) -> (i32, i32) {
    %c0_i32 = arith.constant 0 : i32
    %c0_i32_0 = arith.constant 0 : i32
    return %arg0, %c0_i32 : i32, i32
  }
  func.func @transform_1(%arg0: i32, %arg1: i32) -> (i32, i32) {
    %c0_i32 = arith.constant 0 : i32
    %c0_i32_0 = arith.constant 0 : i32
    return %c0_i32, %arg1 : i32, i32
  }
  func.func @transform_2(%arg0: i32, %arg1: i32) -> (i32, i32) {
    %c0_i32 = arith.constant 0 : i32
    %c0_i32_0 = arith.constant 0 : i32
    return %c0_i32, %arg1 : i32, i32
  }
  func.func @transform_3(%arg0: i32, %arg1: i32) -> (i32, i32) {
    %c0_i32 = arith.constant 0 : i32
    %c0_i32_0 = arith.constant 0 : i32
    return %c0_i32, %arg1 : i32, i32
  }
  func.func @transform_4(%arg0: i32, %arg1: i32) -> (i32, i32) {
    %c0_i32 = arith.constant 0 : i32
    return %arg0, %arg1 : i32, i32
  }
}

</mosaic_0001>

<llo_original>
// kernel: tpu_custom_call.1
$region0: #{tpu_custom_call.1}
  #allocation0 [shape = 'u32[]', space=smem, size = 0x4, offset = 0x4, fixed_abs, tag = 'smem constant byte address 0x4 - core index']
  #allocation1 [shape = 'u32[144,128]{1,0:T(1,128)}', space=vmem, size = 0x12000, scoped, tag = 'internal scratch']
  %s0 = inlined_call_operand.hbm [shape: f32[32,1024], index: 0, kind: input, shape index: {}]
  %s1 = inlined_call_operand.hbm [shape: bf16[1024,128], index: 1, kind: input, shape index: {}]
  %s2 = inlined_call_operand.vmem [shape: f32[1,128], index: 2, kind: input, shape index: {}]
  %s3 = inlined_call_operand.vmem [shape: f32[1,128], index: 3, kind: input, shape index: {}]
  %s4 = inlined_call_operand.hbm [shape: f32[32,128], index: 4, kind: output, shape index: {}]
  %s5 = sld [smem:[#allocation0]]
  $region34: #{tpu_custom_call.1} parent=0
    _
  %s7 = ssub.s32 1, %s5
  %s8 = scalar_select 0, %s7, %s5
  $region1: #{tpu_custom_call.1} parent=0
    #allocation2 [shape = 'u8[131072]{0}', space=vmem, size = 0x20000, scoped, tag = 'input window, operand 0, single buffered']
    #allocation3 [shape = 's32[1]{0}', space=sflag, size = 0x4, scoped, tag = 'scoped memory for tpu_custom_call.1']
    #allocation4 [shape = 's32[1]{0}', space=sflag, size = 0x4, scoped, tag = 'scoped memory for tpu_custom_call.1']
    #allocation5 [shape = 'u8[262144]{0}', space=vmem, size = 0x40000, scoped, tag = 'input window, operand 1, single buffered']
    #allocation6 [shape = 's32[1]{0}', space=sflag, size = 0x4, scoped, tag = 'scoped memory for tpu_custom_call.1']
    #allocation7 [shape = 'u8[16384]{0}', space=vmem, size = 0x4000, scoped, tag = 'output window, operand 0, single buffered']
    %9 = vsyncpa [#allocation3], 0
    %10 = vsyncpa [#allocation6], 0
    %11 = vsyncpa [#allocation4], 0
    // Predicated region
    $region2: #{tpu_custom_call.1} parent=1 // pred_check
      _
    $region3: #{tpu_custom_call.1} parent=1 // pred_check_branch
      %13 = sbr.rel (0) target = $region5
    $region4: #{tpu_custom_call.1} parent=1 // pred_region
      %s15 = ssub.s32 4096, 4096
      %16 = vsyncadd [#allocation3], %s15
      %s17 = sshll.u32 [#allocation2], 4
      %s18 = int_to_ptr.vmem [resolvable:$true] %s17
      %23 = dma.hbm_to_vmem [thread:$0]  %s0, 4096, %s18, [#allocation3], 1024, 1024, 64
    $region5: #{tpu_custom_call.1} parent=1 // pred_fallthru
      _
    // Predicated region
    $region6: #{tpu_custom_call.1} parent=1 // pred_check
      _
    $region7: #{tpu_custom_call.1} parent=1 // pred_check_branch
      %25 = sbr.rel (0) target = $region9
    $region8: #{tpu_custom_call.1} parent=1 // pred_region
      %s27 = ssub.s32 8192, 8192
      %28 = vsyncadd [#allocation6], %s27
      %s29 = sshll.u32 [#allocation5], 4
      %s30 = int_to_ptr.vmem [resolvable:$true] %s29
      %35 = dma.hbm_to_vmem [thread:$0]  %s1, 8192, %s30, [#allocation6], 64, 64, 4
    $region9: #{tpu_custom_call.1} parent=1 // pred_fallthru
      _
    // Predicated region
    $region10: #{tpu_custom_call.1} parent=1 // pred_check
      _
    $region11: #{tpu_custom_call.1} parent=1 // pred_check_branch
      %37 = sbr.rel (0) target = $region13
    $region12: #{tpu_custom_call.1} parent=1 // pred_region
      _
    $region13: #{tpu_custom_call.1} parent=1 // pred_fallthru
      _
    // Predicated region
    $region14: #{tpu_custom_call.1} parent=1 // pred_check
      _
    $region15: #{tpu_custom_call.1} parent=1 // pred_check_branch
      %39 = sbr.rel (0) target = $region17
    $region16: #{tpu_custom_call.1} parent=1 // pred_region
      _
    $region17: #{tpu_custom_call.1} parent=1 // pred_fallthru
      _
    // Predicated region
    $region18: #{tpu_custom_call.1} parent=1 // pred_check
      _
    $region19: #{tpu_custom_call.1} parent=1 // pred_check_branch
      %41 = sbr.rel (0) target = $region21
    $region20: #{tpu_custom_call.1} parent=1 // pred_region
      %42 = dma.done [#allocation3], 4096
    $region21: #{tpu_custom_call.1} parent=1 // pred_fallthru
      _
    // Predicated region
    $region22: #{tpu_custom_call.1} parent=1 // pred_check
      _
    $region23: #{tpu_custom_call.1} parent=1 // pred_check_branch
      %44 = sbr.rel (0) target = $region25
    $region24: #{tpu_custom_call.1} parent=1 // pred_region
      %45 = dma.done [#allocation6], 8192
    $region25: #{tpu_custom_call.1} parent=1 // pred_fallthru
      _
    %v47 = vld [vmem:[#allocation2] sm:$0xff]
    %v48 = vld [vmem:[#allocation2 + $0x8] sm:$0xff]
    %v49 = vld [vmem:[#allocation2 + $0x10] sm:$0xff]
    %v50 = vld [vmem:[#allocation2 + $0x18] sm:$0xff]
    %v51 = vld [vmem:[#allocation2 + $0x20] sm:$0xff]
    %v52 = vld [vmem:[#allocation2 + $0x28] sm:$0xff]
    %v53 = vld [vmem:[#allocation2 + $0x30] sm:$0xff]
    %v54 = vld [vmem:[#allocation2 + $0x38] sm:$0xff]
    %v55 = vld [vmem:[#allocation2 + $0x40] sm:$0xff]
    %v56 = vld [vmem:[#allocation2 + $0x48] sm:$0xff]
    %v57 = vld [vmem:[#allocation2 + $0x50] sm:$0xff]
    %v58 = vld [vmem:[#allocation2 + $0x58] sm:$0xff]
    %v59 = vld [vmem:[#allocation2 + $0x60] sm:$0xff]
    %v60 = vld [vmem:[#allocation2 + $0x68] sm:$0xff]
    %v61 = vld [vmem:[#allocation2 + $0x70] sm:$0xff]
    %v62 = vld [vmem:[#allocation2 + $0x78] sm:$0xff]
    %v63 = vld [vmem:[#allocation2 + $0x80] sm:$0xff]
    %v64 = vld [vmem:[#allocation2 + $0x88] sm:$0xff]
    %v65 = vld [vmem:[#allocation2 + $0x90] sm:$0xff]
    %v66 = vld [vmem:[#allocation2 + $0x98] sm:$0xff]
    %v67 = vld [vmem:[#allocation2 + $0xa0] sm:$0xff]
    %v68 = vld [vmem:[#allocation2 + $0xa8] sm:$0xff]
    %v69 = vld [vmem:[#allocation2 + $0xb0] sm:$0xff]
    %v70 = vld [vmem:[#allocation2 + $0xb8] sm:$0xff]
    %v71 = vld [vmem:[#allocation2 + $0xc0] sm:$0xff]
    %v72 = vld [vmem:[#allocation2 + $0xc8] sm:$0xff]
    %v73 = vld [vmem:[#allocation2 + $0xd0] sm:$0xff]
    %v74 = vld [vmem:[#allocation2 + $0xd8] sm:$0xff]
    %v75 = vld [vmem:[#allocation2 + $0xe0] sm:$0xff]
    %v76 = vld [vmem:[#allocation2 + $0xe8] sm:$0xff]
    %v77 = vld [vmem:[#allocation2 + $0xf0] sm:$0xff]
    %v78 = vld [vmem:[#allocation2 + $0xf8] sm:$0xff]
    %v79 = vpack.c.bf16 %v55, %v47
    %v80 = vpack.c.bf16 %v56, %v48
    %v81 = vpack.c.bf16 %v57, %v49
    %v82 = vpack.c.bf16 %v58, %v50
    %v83 = vpack.c.bf16 %v59, %v51
    %v84 = vpack.c.bf16 %v60, %v52
    %v85 = vpack.c.bf16 %v61, %v53
    %v86 = vpack.c.bf16 %v62, %v54
    %v87 = vpack.c.bf16 %v71, %v63
    %v88 = vpack.c.bf16 %v72, %v64
    %v89 = vpack.c.bf16 %v73, %v65
    %v90 = vpack.c.bf16 %v74, %v66
    %v91 = vpack.c.bf16 %v75, %v67
    %v92 = vpack.c.bf16 %v76, %v68
    %v93 = vpack.c.bf16 %v77, %v69
    %v94 = vpack.c.bf16 %v78, %v70
    %v95 = vld [vmem:[#allocation5] sm:$0xf]
    %v96 = vld [vmem:[#allocation5 + $0x4] sm:$0xf]
    %v97 = vld [vmem:[#allocation5 + $0x8] sm:$0xf]
    %v98 = vld [vmem:[#allocation5 + $0xc] sm:$0xf]
    %v99 = vld [vmem:[#allocation5 + $0x10] sm:$0xf]
    %v100 = vld [vmem:[#allocation5 + $0x14] sm:$0xf]
    %v101 = vld [vmem:[#allocation5 + $0x18] sm:$0xf]
    %v102 = vld [vmem:[#allocation5 + $0x1c] sm:$0xf]
    %v103 = vld [vmem:[#allocation5 + $0x20] sm:$0xf]
    %v104 = vld [vmem:[#allocation5 + $0x24] sm:$0xf]
    %v105 = vld [vmem:[#allocation5 + $0x28] sm:$0xf]
    %v106 = vld [vmem:[#allocation5 + $0x2c] sm:$0xf]
    %v107 = vld [vmem:[#allocation5 + $0x30] sm:$0xf]
    %v108 = vld [vmem:[#allocation5 + $0x34] sm:$0xf]
    %v109 = vld [vmem:[#allocation5 + $0x38] sm:$0xf]
    %v110 = vld [vmem:[#allocation5 + $0x3c] sm:$0xf]
    %v111 = vld [vmem:[#allocation5 + $0x40] sm:$0xf]
    %v112 = vld [vmem:[#allocation5 + $0x44] sm:$0xf]
    %v113 = vld [vmem:[#allocation5 + $0x48] sm:$0xf]
    %v114 = vld [vmem:[#allocation5 + $0x4c] sm:$0xf]
    %v115 = vld [vmem:[#allocation5 + $0x50] sm:$0xf]
    %v116 = vld [vmem:[#allocation5 + $0x54] sm:$0xf]
    %v117 = vld [vmem:[#allocation5 + $0x58] sm:$0xf]
    %v118 = vld [vmem:[#allocation5 + $0x5c] sm:$0xf]
    %v119 = vld [vmem:[#allocation5 + $0x60] sm:$0xf]
    %v120 = vld [vmem:[#allocation5 + $0x64] sm:$0xf]
    %v121 = vld [vmem:[#allocation5 + $0x68] sm:$0xf]
    %v122 = vld [vmem:[#allocation5 + $0x6c] sm:$0xf]
    %v123 = vld [vmem:[#allocation5 + $0x70] sm:$0xf]
    %v124 = vld [vmem:[#allocation5 + $0x74] sm:$0xf]
    %v125 = vld [vmem:[#allocation5 + $0x78] sm:$0xf]
    %v126 = vld [vmem:[#allocation5 + $0x7c] sm:$0xf]
    %v127 = vld [vmem:[#allocation5 + $0x80] sm:$0xf]
    %v128 = vld [vmem:[#allocation5 + $0x84] sm:$0xf]
    %v129 = vld [vmem:[#allocation5 + $0x88] sm:$0xf]
    %v130 = vld [vmem:[#allocation5 + $0x8c] sm:$0xf]
    %v131 = vld [vmem:[#allocation5 + $0x90] sm:$0xf]
    %v132 = vld [vmem:[#allocation5 + $0x94] sm:$0xf]
    %v133 = vld [vmem:[#allocation5 + $0x98] sm:$0xf]
    %v134 = vld [vmem:[#allocation5 + $0x9c] sm:$0xf]
    %v135 = vld [vmem:[#allocation5 + $0xa0] sm:$0xf]
    %v136 = vld [vmem:[#allocation5 + $0xa4] sm:$0xf]
    %v137 = vld [vmem:[#allocation5 + $0xa8] sm:$0xf]
    %v138 = vld [vmem:[#allocation5 + $0xac] sm:$0xf]
    %v139 = vld [vmem:[#allocation5 + $0xb0] sm:$0xf]
    %v140 = vld [vmem:[#allocation5 + $0xb4] sm:$0xf]
    %v141 = vld [vmem:[#allocation5 + $0xb8] sm:$0xf]
    %v142 = vld [vmem:[#allocation5 + $0xbc] sm:$0xf]
    %v143 = vld [vmem:[#allocation5 + $0xc0] sm:$0xf]
    %v144 = vld [vmem:[#allocation5 + $0xc4] sm:$0xf]
    %v145 = vld [vmem:[#allocation5 + $0xc8] sm:$0xf]
    %v146 = vld [vmem:[#allocation5 + $0xcc] sm:$0xf]
    %v147 = vld [vmem:[#allocation5 + $0xd0] sm:$0xf]
    %v148 = vld [vmem:[#allocation5 + $0xd4] sm:$0xf]
    %v149 = vld [vmem:[#allocation5 + $0xd8] sm:$0xf]
    %v150 = vld [vmem:[#allocation5 + $0xdc] sm:$0xf]
    %v151 = vld [vmem:[#allocation5 + $0xe0] sm:$0xf]
    %v152 = vld [vmem:[#allocation5 + $0xe4] sm:$0xf]
    %v153 = vld [vmem:[#allocation5 + $0xe8] sm:$0xf]
    %v154 = vld [vmem:[#allocation5 + $0xec] sm:$0xf]
    %v155 = vld [vmem:[#allocation5 + $0xf0] sm:$0xf]
    %v156 = vld [vmem:[#allocation5 + $0xf4] sm:$0xf]
    %v157 = vld [vmem:[#allocation5 + $0xf8] sm:$0xf]
    %v158 = vld [vmem:[#allocation5 + $0xfc] sm:$0xf]
    %v159 = vld [vmem:[#allocation5 + $0x100] sm:$0xf]
    %v160 = vld [vmem:[#allocation5 + $0x104] sm:$0xf]
    %v161 = vld [vmem:[#allocation5 + $0x108] sm:$0xf]
    %v162 = vld [vmem:[#allocation5 + $0x10c] sm:$0xf]
    %v163 = vld [vmem:[#allocation5 + $0x110] sm:$0xf]
    %v164 = vld [vmem:[#allocation5 + $0x114] sm:$0xf]
    %v165 = vld [vmem:[#allocation5 + $0x118] sm:$0xf]
    %v166 = vld [vmem:[#allocation5 + $0x11c] sm:$0xf]
    %v167 = vld [vmem:[#allocation5 + $0x120] sm:$0xf]
    %v168 = vld [vmem:[#allocation5 + $0x124] sm:$0xf]
    %v169 = vld [vmem:[#allocation5 + $0x128] sm:$0xf]
    %v170 = vld [vmem:[#allocation5 + $0x12c] sm:$0xf]
    %v171 = vld [vmem:[#allocation5 + $0x130] sm:$0xf]
    %v172 = vld [vmem:[#allocation5 + $0x134] sm:$0xf]
    %v173 = vld [vmem:[#allocation5 + $0x138] sm:$0xf]
    %v174 = vld [vmem:[#allocation5 + $0x13c] sm:$0xf]
    %v175 = vld [vmem:[#allocation5 + $0x140] sm:$0xf]
    %v176 = vld [vmem:[#allocation5 + $0x144] sm:$0xf]
    %v177 = vld [vmem:[#allocation5 + $0x148] sm:$0xf]
    %v178 = vld [vmem:[#allocation5 + $0x14c] sm:$0xf]
    %v179 = vld [vmem:[#allocation5 + $0x150] sm:$0xf]
    %v180 = vld [vmem:[#allocation5 + $0x154] sm:$0xf]
    %v181 = vld [vmem:[#allocation5 + $0x158] sm:$0xf]
    %v182 = vld [vmem:[#allocation5 + $0x15c] sm:$0xf]
    %v183 = vld [vmem:[#allocation5 + $0x160] sm:$0xf]
    %v184 = vld [vmem:[#allocation5 + $0x164] sm:$0xf]
    %v185 = vld [vmem:[#allocation5 + $0x168] sm:$0xf]
    %v186 = vld [vmem:[#allocation5 + $0x16c] sm:$0xf]
    %v187 = vld [vmem:[#allocation5 + $0x170] sm:$0xf]
    %v188 = vld [vmem:[#allocation5 + $0x174] sm:$0xf]
    %v189 = vld [vmem:[#allocation5 + $0x178] sm:$0xf]
    %v190 = vld [vmem:[#allocation5 + $0x17c] sm:$0xf]
    %v191 = vld [vmem:[#allocation5 + $0x180] sm:$0xf]
    %v192 = vld [vmem:[#allocation5 + $0x184] sm:$0xf]
    %v193 = vld [vmem:[#allocation5 + $0x188] sm:$0xf]
    %v194 = vld [vmem:[#allocation5 + $0x18c] sm:$0xf]
    %v195 = vld [vmem:[#allocation5 + $0x190] sm:$0xf]
    %v196 = vld [vmem:[#allocation5 + $0x194] sm:$0xf]
    %v197 = vld [vmem:[#allocation5 + $0x198] sm:$0xf]
    %v198 = vld [vmem:[#allocation5 + $0x19c] sm:$0xf]
    %v199 = vld [vmem:[#allocation5 + $0x1a0] sm:$0xf]
    %v200 = vld [vmem:[#allocation5 + $0x1a4] sm:$0xf]
    %v201 = vld [vmem:[#allocation5 + $0x1a8] sm:$0xf]
    %v202 = vld [vmem:[#allocation5 + $0x1ac] sm:$0xf]
    %v203 = vld [vmem:[#allocation5 + $0x1b0] sm:$0xf]
    %v204 = vld [vmem:[#allocation5 + $0x1b4] sm:$0xf]
    %v205 = vld [vmem:[#allocation5 + $0x1b8] sm:$0xf]
    %v206 = vld [vmem:[#allocation5 + $0x1bc] sm:$0xf]
    %v207 = vld [vmem:[#allocation5 + $0x1c0] sm:$0xf]
    %v208 = vld [vmem:[#allocation5 + $0x1c4] sm:$0xf]
    %v209 = vld [vmem:[#allocation5 + $0x1c8] sm:$0xf]
    %v210 = vld [vmem:[#allocation5 + $0x1cc] sm:$0xf]
    %v211 = vld [vmem:[#allocation5 + $0x1d0] sm:$0xf]
    %v212 = vld [vmem:[#allocation5 + $0x1d4] sm:$0xf]
    %v213 = vld [vmem:[#allocation5 + $0x1d8] sm:$0xf]
    %v214 = vld [vmem:[#allocation5 + $0x1dc] sm:$0xf]
    %v215 = vld [vmem:[#allocation5 + $0x1e0] sm:$0xf]
    %v216 = vld [vmem:[#allocation5 + $0x1e4] sm:$0xf]
    %v217 = vld [vmem:[#allocation5 + $0x1e8] sm:$0xf]
    %v218 = vld [vmem:[#allocation5 + $0x1ec] sm:$0xf]
    %v219 = vld [vmem:[#allocation5 + $0x1f0] sm:$0xf]
    %v220 = vld [vmem:[#allocation5 + $0x1f4] sm:$0xf]
    %v221 = vld [vmem:[#allocation5 + $0x1f8] sm:$0xf]
    %v222 = vld [vmem:[#allocation5 + $0x1fc] sm:$0xf]
    %v351 = vunpack.c.l.b16 %v95
    %v352 = vunpack.c.l.b16 %v96
    %v353 = vunpack.c.l.b16 %v97
    %v354 = vunpack.c.l.b16 %v98
    %v355 = vunpack.c.l.b16 %v99
    %v356 = vunpack.c.l.b16 %v100
    %v357 = vunpack.c.l.b16 %v101
    %v358 = vunpack.c.l.b16 %v102
    %v359 = vunpack.c.l.b16 %v103
    %v360 = vunpack.c.l.b16 %v104
    %v361 = vunpack.c.l.b16 %v105
    %v362 = vunpack.c.l.b16 %v106
    %v363 = vunpack.c.l.b16 %v107
    %v364 = vunpack.c.l.b16 %v108
    %v365 = vunpack.c.l.b16 %v109
    %v366 = vunpack.c.l.b16 %v110
    %v367 = vunpack.c.l.b16 %v111
    %v368 = vunpack.c.l.b16 %v112
    %v369 = vunpack.c.l.b16 %v113
    %v370 = vunpack.c.l.b16 %v114
    %v371 = vunpack.c.l.b16 %v115
    %v372 = vunpack.c.l.b16 %v116
    %v373 = vunpack.c.l.b16 %v117
    %v374 = vunpack.c.l.b16 %v118
    %v375 = vunpack.c.l.b16 %v119
    %v376 = vunpack.c.l.b16 %v120
    %v377 = vunpack.c.l.b16 %v121
    %v378 = vunpack.c.l.b16 %v122
    %v379 = vunpack.c.l.b16 %v123
    %v380 = vunpack.c.l.b16 %v124
    %v381 = vunpack.c.l.b16 %v125
    %v382 = vunpack.c.l.b16 %v126
    %v383 = vunpack.c.l.b16 %v127
    %v384 = vunpack.c.l.b16 %v128
    %v385 = vunpack.c.l.b16 %v129
    %v386 = vunpack.c.l.b16 %v130
    %v387 = vunpack.c.l.b16 %v131
    %v388 = vunpack.c.l.b16 %v132
    %v389 = vunpack.c.l.b16 %v133
    %v390 = vunpack.c.l.b16 %v134
    %v391 = vunpack.c.l.b16 %v135
    %v392 = vunpack.c.l.b16 %v136
    %v393 = vunpack.c.l.b16 %v137
    %v394 = vunpack.c.l.b16 %v138
    %v395 = vunpack.c.l.b16 %v139
    %v396 = vunpack.c.l.b16 %v140
    %v397 = vunpack.c.l.b16 %v141
    %v398 = vunpack.c.l.b16 %v142
    %v399 = vunpack.c.l.b16 %v143
    %v400 = vunpack.c.l.b16 %v144
    %v401 = vunpack.c.l.b16 %v145
    %v402 = vunpack.c.l.b16 %v146
    %v403 = vunpack.c.l.b16 %v147
    %v404 = vunpack.c.l.b16 %v148
    %v405 = vunpack.c.l.b16 %v149
    %v406 = vunpack.c.l.b16 %v150
    %v407 = vunpack.c.l.b16 %v151
    %v408 = vunpack.c.l.b16 %v152
    %v409 = vunpack.c.l.b16 %v153
    %v410 = vunpack.c.l.b16 %v154
    %v411 = vunpack.c.l.b16 %v155
    %v412 = vunpack.c.l.b16 %v156
    %v413 = vunpack.c.l.b16 %v157
    %v414 = vunpack.c.l.b16 %v158
    %v415 = vunpack.c.l.b16 %v159
    %v416 = vunpack.c.l.b16 %v160
    %v417 = vunpack.c.l.b16 %v161
    %v418 = vunpack.c.l.b16 %v162
    %v419 = vunpack.c.l.b16 %v163
    %v420 = vunpack.c.l.b16 %v164
    %v421 = vunpack.c.l.b16 %v165
    %v422 = vunpack.c.l.b16 %v166
    %v423 = vunpack.c.l.b16 %v167
    %v424 = vunpack.c.l.b16 %v168
    %v425 = vunpack.c.l.b16 %v169
    %v426 = vunpack.c.l.b16 %v170
    %v427 = vunpack.c.l.b16 %v171
    %v428 = vunpack.c.l.b16 %v172
    %v429 = vunpack.c.l.b16 %v173
    %v430 = vunpack.c.l.b16 %v174
    %v431 = vunpack.c.l.b16 %v175
    %v432 = vunpack.c.l.b16 %v176
    %v433 = vunpack.c.l.b16 %v177
    %v434 = vunpack.c.l.b16 %v178
    %v435 = vunpack.c.l.b16 %v179
    %v436 = vunpack.c.l.b16 %v180
    %v437 = vunpack.c.l.b16 %v181
    %v438 = vunpack.c.l.b16 %v182
    %v439 = vunpack.c.l.b16 %v183
    %v440 = vunpack.c.l.b16 %v184
    %v441 = vunpack.c.l.b16 %v185
    %v442 = vunpack.c.l.b16 %v186
    %v443 = vunpack.c.l.b16 %v187
    %v444 = vunpack.c.l.b16 %v188
    %v445 = vunpack.c.l.b16 %v189
    %v446 = vunpack.c.l.b16 %v190
    %v447 = vunpack.c.l.b16 %v191
    %v448 = vunpack.c.l.b16 %v192
    %v449 = vunpack.c.l.b16 %v193
    %v450 = vunpack.c.l.b16 %v194
    %v451 = vunpack.c.l.b16 %v195
    %v452 = vunpack.c.l.b16 %v196
    %v453 = vunpack.c.l.b16 %v197
    %v454 = vunpack.c.l.b16 %v198
    %v455 = vunpack.c.l.b16 %v199
    %v456 = vunpack.c.l.b16 %v200
    %v457 = vunpack.c.l.b16 %v201
    %v458 = vunpack.c.l.b16 %v202
    %v459 = vunpack.c.l.b16 %v203
    %v460 = vunpack.c.l.b16 %v204
    %v461 = vunpack.c.l.b16 %v205
    %v462 = vunpack.c.l.b16 %v206
    %v463 = vunpack.c.l.b16 %v207
    %v464 = vunpack.c.l.b16 %v208
    %v465 = vunpack.c.l.b16 %v209
    %v466 = vunpack.c.l.b16 %v210
    %v467 = vunpack.c.l.b16 %v211
    %v468 = vunpack.c.l.b16 %v212
    %v469 = vunpack.c.l.b16 %v213
    %v470 = vunpack.c.l.b16 %v214
    %v471 = vunpack.c.l.b16 %v215
    %v472 = vunpack.c.l.b16 %v216
    %v473 = vunpack.c.l.b16 %v217
    %v474 = vunpack.c.l.b16 %v218
    %v475 = vunpack.c.l.b16 %v219
    %v476 = vunpack.c.l.b16 %v220
    %v477 = vunpack.c.l.b16 %v221
    %v478 = vunpack.c.l.b16 %v222
    %v479 = vpack.c.b16 %v352, %v351
    %v480 = vpack.c.b16 %v354, %v353
    %v481 = vpack.c.b16 %v356, %v355
    %v482 = vpack.c.b16 %v358, %v357
    %v483 = vpack.c.b16 %v360, %v359
    %v484 = vpack.c.b16 %v362, %v361
    %v485 = vpack.c.b16 %v364, %v363
    %v486 = vpack.c.b16 %v366, %v365
    %v487 = vpack.c.b16 %v368, %v367
    %v488 = vpack.c.b16 %v370, %v369
    %v489 = vpack.c.b16 %v372, %v371
    %v490 = vpack.c.b16 %v374, %v373
    %v491 = vpack.c.b16 %v376, %v375
    %v492 = vpack.c.b16 %v378, %v377
    %v493 = vpack.c.b16 %v380, %v379
    %v494 = vpack.c.b16 %v382, %v381
    %v495 = vpack.c.b16 %v384, %v383
    %v496 = vpack.c.b16 %v386, %v385
    %v497 = vpack.c.b16 %v388, %v387
    %v498 = vpack.c.b16 %v390, %v389
    %v499 = vpack.c.b16 %v392, %v391
    %v500 = vpack.c.b16 %v394, %v393
    %v501 = vpack.c.b16 %v396, %v395
    %v502 = vpack.c.b16 %v398, %v397
    %v503 = vpack.c.b16 %v400, %v399
    %v504 = vpack.c.b16 %v402, %v401
    %v505 = vpack.c.b16 %v404, %v403
    %v506 = vpack.c.b16 %v406, %v405
    %v507 = vpack.c.b16 %v408, %v407
    %v508 = vpack.c.b16 %v410, %v409
    %v509 = vpack.c.b16 %v412, %v411
    %v510 = vpack.c.b16 %v414, %v413
    %v511 = vpack.c.b16 %v416, %v415
    %v512 = vpack.c.b16 %v418, %v417
    %v513 = vpack.c.b16 %v420, %v419
    %v514 = vpack.c.b16 %v422, %v421
    %v515 = vpack.c.b16 %v424, %v423
    %v516 = vpack.c.b16 %v426, %v425
    %v517 = vpack.c.b16 %v428, %v427
    %v518 = vpack.c.b16 %v430, %v429
    %v519 = vpack.c.b16 %v432, %v431
    %v520 = vpack.c.b16 %v434, %v433
    %v521 = vpack.c.b16 %v436, %v435
    %v522 = vpack.c.b16 %v438, %v437
    %v523 = vpack.c.b16 %v440, %v439
    %v524 = vpack.c.b16 %v442, %v441
    %v525 = vpack.c.b16 %v444, %v443
    %v526 = vpack.c.b16 %v446, %v445
    %v527 = vpack.c.b16 %v448, %v447
    %v528 = vpack.c.b16 %v450, %v449
    %v529 = vpack.c.b16 %v452, %v451
    %v530 = vpack.c.b16 %v454, %v453
    %v531 = vpack.c.b16 %v456, %v455
    %v532 = vpack.c.b16 %v458, %v457
    %v533 = vpack.c.b16 %v460, %v459
    %v534 = vpack.c.b16 %v462, %v461
    %v535 = vpack.c.b16 %v464, %v463
    %v536 = vpack.c.b16 %v466, %v465
    %v537 = vpack.c.b16 %v468, %v467
    %v538 = vpack.c.b16 %v470, %v469
    %v539 = vpack.c.b16 %v472, %v471
    %v540 = vpack.c.b16 %v474, %v473
    %v541 = vpack.c.b16 %v476, %v475
    %v542 = vpack.c.b16 %v478, %v477
    %607 = vmatprep.subr.bf16.mxu0 0
    %608 = vmatpush1.bf16.msra.mxu0 %v479
    %609 = vmatprep.subr.bf16.mxu0 0
    %610 = vmatpush1.bf16.msra.mxu0 %v480
    %611 = vmatprep.subr.bf16.mxu0 0
    %612 = vmatpush1.bf16.msra.mxu0 %v481
    %613 = vmatprep.subr.bf16.mxu0 0
    %614 = vmatpush1.bf16.msra.mxu0 %v482
    %615 = vmatprep.subr.bf16.mxu0 0
    %616 = vmatpush1.bf16.msra.mxu0 %v483
    %617 = vmatprep.subr.bf16.mxu0 0
    %618 = vmatpush1.bf16.msra.mxu0 %v484
    %619 = vmatprep.subr.bf16.mxu0 0
    %620 = vmatpush1.bf16.msra.mxu0 %v485
    %621 = vmatprep.subr.bf16.mxu0 0
    %622 = vmatpush1.bf16.msra.mxu0 %v486
    %623 = vmatprep.subr.bf16.mxu0 0
    %624 = vmatpush1.bf16.msra.mxu0 %v487
    %625 = vmatprep.subr.bf16.mxu0 0
    %626 = vmatpush1.bf16.msra.mxu0 %v488
    %627 = vmatprep.subr.bf16.mxu0 0
    %628 = vmatpush1.bf16.msra.mxu0 %v489
    %629 = vmatprep.subr.bf16.mxu0 0
    %630 = vmatpush1.bf16.msra.mxu0 %v490
    %631 = vmatprep.subr.bf16.mxu0 0
    %632 = vmatpush1.bf16.msra.mxu0 %v491
    %633 = vmatprep.subr.bf16.mxu0 0
    %634 = vmatpush1.bf16.msra.mxu0 %v492
    %635 = vmatprep.subr.bf16.mxu0 0
    %636 = vmatpush1.bf16.msra.mxu0 %v493
    %637 = vmatprep.subr.bf16.mxu0 0
    %638 = vmatpush1.bf16.msra.mxu0 %v494
    %639 = vmatprep.mubr.bf16.mxu0 %v80
    %640 = vmatmul.mubr.bf16.gmra.mrb[0].mxu0 %v79
    %v641 = vpop.f32.mrb[0].mxu0
    %v642 = vadd.f32 0.0, %v641
    %v643 = vpop.f32.mrb[0].mxu0
    %v644 = vpop.f32.mrb[0].mxu0
    %v645 = vadd.f32 0.0, %v644
    %v646 = vpop.f32.mrb[0].mxu0
    %647 = vmatprep.mubr.bf16.mxu0 %v88
    %648 = vmatmul.mubr.bf16.gmra.mrb[0].mxu0 %v87
    %v649 = vpop.f32.mrb[0].mxu0
    %v650 = vadd.f32 0.0, %v649
    %v651 = vpop.f32.mrb[0].mxu0
    %v652 = vpop.f32.mrb[0].mxu0
    %v653 = vadd.f32 0.0, %v652
    %v654 = vpop.f32.mrb[0].mxu0
    %655 = vdwg.mxu0
    %656 = vmatprep.subr.bf16.mxu0 0
    %657 = vmatpush1.bf16.msra.mxu0 %v495
    %658 = vmatprep.subr.bf16.mxu0 0
    %659 = vmatpush1.bf16.msra.mxu0 %v496
    %660 = vmatprep.subr.bf16.mxu0 0
    %661 = vmatpush1.bf16.msra.mxu0 %v497
    %662 = vmatprep.subr.bf16.mxu0 0
    %663 = vmatpush1.bf16.msra.mxu0 %v498
    %664 = vmatprep.subr.bf16.mxu0 0
    %665 = vmatpush1.bf16.msra.mxu0 %v499
    %666 = vmatprep.subr.bf16.mxu0 0
    %667 = vmatpush1.bf16.msra.mxu0 %v500
    %668 = vmatprep.subr.bf16.mxu0 0
    %669 = vmatpush1.bf16.msra.mxu0 %v501
    %670 = vmatprep.subr.bf16.mxu0 0
    %671 = vmatpush1.bf16.msra.mxu0 %v502
    %672 = vmatprep.subr.bf16.mxu0 0
    %673 = vmatpush1.bf16.msra.mxu0 %v503
    %674 = vmatprep.subr.bf16.mxu0 0
    %675 = vmatpush1.bf16.msra.mxu0 %v504
    %676 = vmatprep.subr.bf16.mxu0 0
    %677 = vmatpush1.bf16.msra.mxu0 %v505
    %678 = vmatprep.subr.bf16.mxu0 0
    %679 = vmatpush1.bf16.msra.mxu0 %v506
    %680 = vmatprep.subr.bf16.mxu0 0
    %681 = vmatpush1.bf16.msra.mxu0 %v507
    %682 = vmatprep.subr.bf16.mxu0 0
    %683 = vmatpush1.bf16.msra.mxu0 %v508
    %684 = vmatprep.subr.bf16.mxu0 0
    %685 = vmatpush1.bf16.msra.mxu0 %v509
    %686 = vmatprep.subr.bf16.mxu0 0
    %687 = vmatpush1.bf16.msra.mxu0 %v510
    %688 = vmatprep.mubr.bf16.mxu0 %v82
    %689 = vmatmul.mubr.bf16.gmra.mrb[0].mxu0 %v81
    %v690 = vpop.f32.mrb[0].mxu0
    %v691 = vadd.f32 %v642, %v690
    %v692 = vpop.f32.mrb[0].mxu0
    %v693 = vpop.f32.mrb[0].mxu0
    %v694 = vadd.f32 %v645, %v693
    %v695 = vpop.f32.mrb[0].mxu0
    %696 = vmatprep.mubr.bf16.mxu0 %v90
    %697 = vmatmul.mubr.bf16.gmra.mrb[0].mxu0 %v89
    %v698 = vpop.f32.mrb[0].mxu0
    %v699 = vadd.f32 %v650, %v698
    %v700 = vpop.f32.mrb[0].mxu0
    %v701 = vpop.f32.mrb[0].mxu0
    %v702 = vadd.f32 %v653, %v701
    %v703 = vpop.f32.mrb[0].mxu0
    %704 = vdwg.mxu0
    %705 = vmatprep.subr.bf16.mxu0 0
    %706 = vmatpush1.bf16.msra.mxu0 %v511
    %707 = vmatprep.subr.bf16.mxu0 0
    %708 = vmatpush1.bf16.msra.mxu0 %v512
    %709 = vmatprep.subr.bf16.mxu0 0
    %710 = vmatpush1.bf16.msra.mxu0 %v513
    %711 = vmatprep.subr.bf16.mxu0 0
    %712 = vmatpush1.bf16.msra.mxu0 %v514
    %713 = vmatprep.subr.bf16.mxu0 0
    %714 = vmatpush1.bf16.msra.mxu0 %v515
    %715 = vmatprep.subr.bf16.mxu0 0
    %716 = vmatpush1.bf16.msra.mxu0 %v516
    %717 = vmatprep.subr.bf16.mxu0 0
    %718 = vmatpush1.bf16.msra.mxu0 %v517
    %719 = vmatprep.subr.bf16.mxu0 0
    %720 = vmatpush1.bf16.msra.mxu0 %v518
    %721 = vmatprep.subr.bf16.mxu0 0
    %722 = vmatpush1.bf16.msra.mxu0 %v519
    %723 = vmatprep.subr.bf16.mxu0 0
    %724 = vmatpush1.bf16.msra.mxu0 %v520
    %725 = vmatprep.subr.bf16.mxu0 0
    %726 = vmatpush1.bf16.msra.mxu0 %v521
    %727 = vmatprep.subr.bf16.mxu0 0
    %728 = vmatpush1.bf16.msra.mxu0 %v522
    %729 = vmatprep.subr.bf16.mxu0 0
    %730 = vmatpush1.bf16.msra.mxu0 %v523
    %731 = vmatprep.subr.bf16.mxu0 0
    %732 = vmatpush1.bf16.msra.mxu0 %v524
    %733 = vmatprep.subr.bf16.mxu0 0
    %734 = vmatpush1.bf16.msra.mxu0 %v525
    %735 = vmatprep.subr.bf16.mxu0 0
    %736 = vmatpush1.bf16.msra.mxu0 %v526
    %737 = vmatprep.mubr.bf16.mxu0 %v84
    %738 = vmatmul.mubr.bf16.gmra.mrb[0].mxu0 %v83
    %v739 = vpop.f32.mrb[0].mxu0
    %v740 = vadd.f32 %v691, %v739
    %v741 = vpop.f32.mrb[0].mxu0
    %v742 = vpop.f32.mrb[0].mxu0
    %v743 = vadd.f32 %v694, %v742
    %v744 = vpop.f32.mrb[0].mxu0
    %745 = vmatprep.mubr.bf16.mxu0 %v92
    %746 = vmatmul.mubr.bf16.gmra.mrb[0].mxu0 %v91
    %v747 = vpop.f32.mrb[0].mxu0
    %v748 = vadd.f32 %v699, %v747
    %v749 = vpop.f32.mrb[0].mxu0
    %v750 = vpop.f32.mrb[0].mxu0
    %v751 = vadd.f32 %v702, %v750
    %v752 = vpop.f32.mrb[0].mxu0
    %753 = vdwg.mxu0
    %754 = vmatprep.subr.bf16.mxu0 0
    %755 = vmatpush1.bf16.msra.mxu0 %v527
    %756 = vmatprep.subr.bf16.mxu0 0
    %757 = vmatpush1.bf16.msra.mxu0 %v528
    %758 = vmatprep.subr.bf16.mxu0 0
    %759 = vmatpush1.bf16.msra.mxu0 %v529
    %760 = vmatprep.subr.bf16.mxu0 0
    %761 = vmatpush1.bf16.msra.mxu0 %v530
    %762 = vmatprep.subr.bf16.mxu0 0
    %763 = vmatpush1.bf16.msra.mxu0 %v531
    %764 = vmatprep.subr.bf16.mxu0 0
    %765 = vmatpush1.bf16.msra.mxu0 %v532
    %766 = vmatprep.subr.bf16.mxu0 0
    %767 = vmatpush1.bf16.msra.mxu0 %v533
    %768 = vmatprep.subr.bf16.mxu0 0
    %769 = vmatpush1.bf16.msra.mxu0 %v534
    %770 = vmatprep.subr.bf16.mxu0 0
    %771 = vmatpush1.bf16.msra.mxu0 %v535
    %772 = vmatprep.subr.bf16.mxu0 0
    %773 = vmatpush1.bf16.msra.mxu0 %v536
    %774 = vmatprep.subr.bf16.mxu0 0
    %775 = vmatpush1.bf16.msra.mxu0 %v537
    %776 = vmatprep.subr.bf16.mxu0 0
    %777 = vmatpush1.bf16.msra.mxu0 %v538
    %778 = vmatprep.subr.bf16.mxu0 0
    %779 = vmatpush1.bf16.msra.mxu0 %v539
    %780 = vmatprep.subr.bf16.mxu0 0
    %781 = vmatpush1.bf16.msra.mxu0 %v540
    %782 = vmatprep.subr.bf16.mxu0 0
    %783 = vmatpush1.bf16.msra.mxu0 %v541
    %784 = vmatprep.subr.bf16.mxu0 0
    %785 = vmatpush1.bf16.msra.mxu0 %v542
    %786 = vmatprep.mubr.bf16.mxu0 %v86
    %787 = vmatmul.mubr.bf16.gmra.mrb[0].mxu0 %v85
    %v788 = vpop.f32.mrb[0].mxu0
    %v789 = vadd.f32 %v740, %v788
    %v790 = vpop.f32.mrb[0].mxu0
    %v791 = vpop.f32.mrb[0].mxu0
    %v792 = vadd.f32 %v743, %v791
    %v793 = vpop.f32.mrb[0].mxu0
    %794 = vmatprep.mubr.bf16.mxu0 %v94
    %795 = vmatmul.mubr.bf16.gmra.mrb[0].mxu0 %v93
    %v796 = vpop.f32.mrb[0].mxu0
    %v797 = vadd.f32 %v748, %v796
    %v798 = vpop.f32.mrb[0].mxu0
    %v799 = vpop.f32.mrb[0].mxu0
    %v800 = vadd.f32 %v751, %v799
    %v801 = vpop.f32.mrb[0].mxu0
    %802 = vdwg.mxu0
    %v803 = vld [vmem:[%s2] sm:$0x1]
    %v805 = vlaneseq
    %v806 = vshrl.u32 %v805, 7
    %v807 = vsub.s32 0, %v806
    %v808 = vrot.slane %v803, %v807
    %v810 = vmul.f32 %v789, %v808
    %v811 = vmul.f32 %v792, %v808
    %v812 = vmul.f32 %v797, %v808
    %v813 = vmul.f32 %v800, %v808
    %v814 = vld [vmem:[%s3] sm:$0x1]
    %v816 = vlaneseq
    %v817 = vshrl.u32 %v816, 7
    %v818 = vsub.s32 0, %v817
    %v819 = vrot.slane %v814, %v818
    %v821 = vadd.f32 %v810, %v819
    %v822 = vadd.f32 %v811, %v819
    %v823 = vadd.f32 %v812, %v819
    %v824 = vadd.f32 %v813, %v819
    %825 = vst [vmem:[#allocation7] sm:$0xff] %v821
    %826 = vst [vmem:[#allocation7 + $0x8] sm:$0xff] %v822
    %827 = vst [vmem:[#allocation7 + $0x10] sm:$0xff] %v823
    %828 = vst [vmem:[#allocation7 + $0x18] sm:$0xff] %v824
    // Predicated region
    $region26: #{tpu_custom_call.1} parent=1 // pred_check
      _
    $region27: #{tpu_custom_call.1} parent=1 // pred_check_branch
      %830 = sbr.rel (0) target = $region29
    $region28: #{tpu_custom_call.1} parent=1 // pred_region
      %s832 = ssub.s32 512, 512
      %833 = vsyncadd [#allocation4], %s832
      %s834 = sshll.u32 [#allocation7], 4
      %s835 = int_to_ptr.vmem [resolvable:$true] %s834
      %840 = dma.vmem_to_hbm [thread:$0]  %s835, 512, %s4, [#allocation4], 128, 128, 8
    $region29: #{tpu_custom_call.1} parent=1 // pred_fallthru
      _
    // Predicated region
    $region30: #{tpu_custom_call.1} parent=1 // pred_check
      _
    $region31: #{tpu_custom_call.1} parent=1 // pred_check_branch
      %842 = sbr.rel (0) target = $region33
    $region32: #{tpu_custom_call.1} parent=1 // pred_region
      %843 = dma.done [#allocation4], 512
    $region33: #{tpu_custom_call.1} parent=1 // pred_fallthru
      _
    %844 = vsyncpa [#allocation3], 1
    %845 = vsyncpa [#allocation6], 1
    %846 = vsyncpa [#allocation4], 1

</llo_original>
